<compile_context>
chip_gen: v6e
topology: v6e:2x2x1
jax: 0.10.0
libtpu: 0.0.40
codegen_flags: <defaults>
</compile_context>

<pallas_src>
import functools

import jax
import jax.numpy as jnp
from jax.experimental import pallas as pl
from jax.experimental.pallas import tpu as pltpu

NUM_CLASSES = 3
ALPHA = 0.5
GAMMA = 5            # Python int -> integer_pow (pure VPU multiplies)
LANE = 128
TARGET_ROWS = 1024   # sublane rows per block (bn*ts); ~6 MiB double-buffered


def focal_loss_kernel(logits_ref, targets_ref, out_ref, *, n_total, p_total):
    # Block: (bn, C, ts, 128); pixels are lane-dense, classes sit on a tiny
    # untiled axis so the class reduction is unrolled elementwise VPU work.
    bn, num_c, ts, lane = logits_ref.shape

    # Hoisted single load of each input block (every element read once).
    x = logits_ref[...].astype(jnp.float32)    # (bn, C, ts, 128)
    t = targets_ref[...].astype(jnp.float32)   # (bn, C, ts, 128)
    xs = [x[:, c] for c in range(num_c)]       # each (bn, ts, 128)
    tg = [t[:, c] for c in range(num_c)]

    # Numerically stable log-softmax over classes, fully unrolled.
    m = xs[0]
    for c in range(1, num_c):
        m = jnp.maximum(m, xs[c])
    ds = [xc - m for xc in xs]                 # computed once, reused below

    s = jnp.exp(ds[0])
    for c in range(1, num_c):
        s = s + jnp.exp(ds[c])
    lse = jnp.log(s)

    logpt = tg[0] * (ds[0] - lse)
    for c in range(1, num_c):
        logpt = logpt + tg[c] * (ds[c] - lse)  # (bn, ts, 128), <= 0

    pt = jnp.exp(logpt)
    loss = (-ALPHA) * (1.0 - pt) ** GAMMA * logpt   # (bn, ts, 128), >= 0

    # Mask grid-block overrun rows (unspecified data) with a select so that
    # NaN/inf garbage cannot leak into the partial sum.
    need_b_mask = (n_total % bn) != 0
    need_r_mask = (p_total % ts) != 0
    if need_b_mask or need_r_mask:
        valid = None
        if need_b_mask:
            b_idx = (pl.program_id(0) * bn
                     + jax.lax.broadcasted_iota(jnp.int32, loss.shape, 0))
            valid = b_idx < n_total
        if need_r_mask:
            r_idx = (pl.program_id(1) * ts
                     + jax.lax.broadcasted_iota(jnp.int32, loss.shape, 1))
            r_ok = r_idx < p_total
            valid = r_ok if valid is None else (valid & r_ok)
        loss = jnp.where(valid, loss, 0.0)

    # Lane-dense per-block partial sum: reduce batch + sublane rows, keep lanes.
    psum = jnp.sum(loss, axis=0)                      # (ts, 128)
    psum = jnp.sum(psum, axis=0, keepdims=True)       # (1, 128)
    out_ref[...] = psum.reshape(1, 1, 1, lane)


def focal_loss(inputs, targets, *, target_rows=TARGET_ROWS):
    """inputs, targets: (N, C, H, W); targets are per-pixel class probabilities."""
    n, c, h, w = inputs.shape
    hw = h * w
    n_pixels = n * hw                    # true pixel count (mean denominator)

    # Pixel axis -> (p, 128) lane-dense layout. Pad ONLY to a multiple of 128
    # (and only when needed); zero logits+targets -> logpt=0 -> pt=1 -> loss=0,
    # so zero-padding is numerically safe.
    p = -(-hw // LANE)
    hw_pad = p * LANE

    det = inputs.reshape(n, c, hw)
    lab = targets.reshape(n, c, hw)
    if hw_pad != hw:
        pad = hw_pad - hw
        det = jnp.pad(det, ((0, 0), (0, 0), (0, pad)))
        lab = jnp.pad(lab, ((0, 0), (0, 0), (0, pad)))
    det = det.reshape(n, c, p, LANE)
    lab = lab.reshape(n, c, p, LANE)

    # Tile selection: keep bn*ts <= target_rows sublane rows per block.
    #  - large images: bn=1, ts=target_rows (multiple of 8); the last pixel-row
    #    block may overrun (masked in-kernel, no jnp.pad copy).
    #  - small images: ts=p (equals full array dim -> satisfies the (8,128)
    #    rule) and the batch is folded so each step still moves ~MB of data.
    if p >= target_rows:
        bn, ts = 1, target_rows
    else:
        ts = p
        bn = min(n, max(1, target_rows // p))

    gi = -(-n // bn)
    gj = -(-p // ts)

    kernel = functools.partial(focal_loss_kernel, n_total=n, p_total=p)

    partials = pl.pallas_call(
        kernel,
        out_shape=jax.ShapeDtypeStruct((gi, gj, 1, LANE), jnp.float32),
        grid_spec=pltpu.PrefetchScalarGridSpec(
            num_scalar_prefetch=0,
            grid=(gi, gj),
            in_specs=[
                pl.BlockSpec((bn, c, ts, LANE), lambda i, j: (i, 0, j, 0)),
                pl.BlockSpec((bn, c, ts, LANE), lambda i, j: (i, 0, j, 0)),
            ],
            out_specs=pl.BlockSpec((1, 1, 1, LANE), lambda i, j: (i, j, 0, 0)),
        ),
        compiler_params=pltpu.CompilerParams(
            dimension_semantics=("parallel", "parallel")),
    )(det, lab)

    # Final (tiny) cross-lane/cross-block reduction + mean, done once in XLA.
    return jnp.sum(partials) / n_pixels


def focal_loss_ref(inputs, targets):
    # Same math as the PyTorch module (the mean is permutation-invariant, so
    # the transpose/view shuffle need not be reproduced).
    logp = jax.nn.log_softmax(inputs.astype(jnp.float32), axis=1)
    logpt = jnp.sum(targets.astype(jnp.float32) * logp, axis=1)
    pt = jnp.exp(logpt)
    return jnp.mean(-ALPHA * (1.0 - pt) ** GAMMA * logpt)


if __name__ == "__main__":
    key = jax.random.PRNGKey(0)

    def make(shape, k):
        k1, k2 = jax.random.split(k)
        logits = jax.random.normal(k1, shape, dtype=jnp.float32)
        tgt = jax.nn.softmax(
            jax.random.normal(k2, shape, dtype=jnp.float32), axis=1)
        return logits, tgt

    k0, k1, k2 = jax.random.split(key, 3)

    # Main case (module defaults: num_classes=3): N=2, C=3, 16x16.
    x, t = make((2, NUM_CLASSES, 16, 16), k0)
    out = jax.block_until_ready(focal_loss(x, t))
    ref = jax.block_until_ready(focal_loss_ref(x, t))
    assert jnp.allclose(out, ref, rtol=1e-5, atol=1e-6), (out, ref)

    # Ragged H*W (128-lane pad path) + batch folding with batch-overrun mask.
    x, t = make((3, NUM_CLASSES, 13, 10), k1)       # hw=130 -> p=2
    out = jax.block_until_ready(focal_loss(x, t, target_rows=4))  # bn=2, gi=2
    ref = focal_loss_ref(x, t)
    assert jnp.allclose(out, ref, rtol=1e-5, atol=1e-6), (out, ref)

    # Pixel-row overrun mask path (p % ts != 0, no jnp.pad of the row axis).
    x, t = make((2, NUM_CLASSES, 16, 80), k2)       # hw=1280 -> p=10
    out = jax.block_until_ready(focal_loss(x, t, target_rows=8))  # ts=8, gj=2
    ref = focal_loss_ref(x, t)
    assert jnp.allclose(out, ref, rtol=1e-5, atol=1e-6), (out, ref)

    print("KERNEL_OK")
</pallas_src>

<mosaic_0001>
module attributes {stable_mosaic.version = 11 : i64} {
  func.func @focal_loss_kernel(%arg0: i32, %arg1: i32, %arg2: memref<2x3x2x128xf32, #tpu.memory_space<vmem>>, %arg3: memref<2x3x2x128xf32, #tpu.memory_space<vmem>>, %arg4: memref<1x1x1x128xf32, #tpu.memory_space<vmem>>) attributes {dimension_semantics = [#tpu.dimension_semantics<parallel>, #tpu.dimension_semantics<parallel>], iteration_bounds = array<i64: 1, 1>, scalar_prefetch = 0 : i64, scratch_operands = 0 : i64, tpu.core_type = #tpu.core_type<tc>, window_params = [{transform_indices = @transform_0, window_bounds = array<i64: 2, 3, 2, 128>}, {transform_indices = @transform_1, window_bounds = array<i64: 2, 3, 2, 128>}, {transform_indices = @transform_2, window_bounds = array<i64: 1, 1, 1, 128>}]} {
    %c0 = arith.constant 0 : index
    %c0_0 = arith.constant 0 : index
    %c0_1 = arith.constant 0 : index
    %c0_2 = arith.constant 0 : index
    %0 = vector.load %arg2[%c0, %c0_0, %c0_1, %c0_2] : memref<2x3x2x128xf32, #tpu.memory_space<vmem>>, vector<2x3x2x128xf32>
    %c0_3 = arith.constant 0 : index
    %c0_4 = arith.constant 0 : index
    %c0_5 = arith.constant 0 : index
    %c0_6 = arith.constant 0 : index
    %1 = vector.load %arg3[%c0_3, %c0_4, %c0_5, %c0_6] : memref<2x3x2x128xf32, #tpu.memory_space<vmem>>, vector<2x3x2x128xf32>
    %2 = vector.extract_strided_slice %0 {offsets = [0, 0, 0, 0], sizes = [2, 1, 2, 128], strides = [1, 1, 1, 1]} : vector<2x3x2x128xf32> to vector<2x1x2x128xf32>
    %3 = vector.shape_cast %2 : vector<2x1x2x128xf32> to vector<2x2x128xf32>
    %4 = vector.extract_strided_slice %0 {offsets = [0, 1, 0, 0], sizes = [2, 1, 2, 128], strides = [1, 1, 1, 1]} : vector<2x3x2x128xf32> to vector<2x1x2x128xf32>
    %5 = vector.shape_cast %4 : vector<2x1x2x128xf32> to vector<2x2x128xf32>
    %6 = vector.extract_strided_slice %0 {offsets = [0, 2, 0, 0], sizes = [2, 1, 2, 128], strides = [1, 1, 1, 1]} : vector<2x3x2x128xf32> to vector<2x1x2x128xf32>
    %7 = vector.shape_cast %6 : vector<2x1x2x128xf32> to vector<2x2x128xf32>
    %8 = vector.extract_strided_slice %1 {offsets = [0, 0, 0, 0], sizes = [2, 1, 2, 128], strides = [1, 1, 1, 1]} : vector<2x3x2x128xf32> to vector<2x1x2x128xf32>
    %9 = vector.shape_cast %8 : vector<2x1x2x128xf32> to vector<2x2x128xf32>
    %10 = vector.extract_strided_slice %1 {offsets = [0, 1, 0, 0], sizes = [2, 1, 2, 128], strides = [1, 1, 1, 1]} : vector<2x3x2x128xf32> to vector<2x1x2x128xf32>
    %11 = vector.shape_cast %10 : vector<2x1x2x128xf32> to vector<2x2x128xf32>
    %12 = vector.extract_strided_slice %1 {offsets = [0, 2, 0, 0], sizes = [2, 1, 2, 128], strides = [1, 1, 1, 1]} : vector<2x3x2x128xf32> to vector<2x1x2x128xf32>
    %13 = vector.shape_cast %12 : vector<2x1x2x128xf32> to vector<2x2x128xf32>
    %14 = arith.maximumf %3, %5 : vector<2x2x128xf32>
    %15 = arith.maximumf %14, %7 : vector<2x2x128xf32>
    %16 = arith.subf %3, %15 : vector<2x2x128xf32>
    %17 = arith.subf %5, %15 : vector<2x2x128xf32>
    %18 = arith.subf %7, %15 : vector<2x2x128xf32>
    %19 = math.exp %16 : vector<2x2x128xf32>
    %20 = math.exp %17 : vector<2x2x128xf32>
    %21 = arith.addf %19, %20 : vector<2x2x128xf32>
    %22 = math.exp %18 : vector<2x2x128xf32>
    %23 = arith.addf %21, %22 : vector<2x2x128xf32>
    %24 = math.log %23 : vector<2x2x128xf32>
    %25 = arith.subf %16, %24 : vector<2x2x128xf32>
    %26 = arith.mulf %9, %25 : vector<2x2x128xf32>
    %27 = arith.subf %17, %24 : vector<2x2x128xf32>
    %28 = arith.mulf %11, %27 : vector<2x2x128xf32>
    %29 = arith.addf %26, %28 : vector<2x2x128xf32>
    %30 = arith.subf %18, %24 : vector<2x2x128xf32>
    %31 = arith.mulf %13, %30 : vector<2x2x128xf32>
    %32 = arith.addf %29, %31 : vector<2x2x128xf32>
    %33 = math.exp %32 : vector<2x2x128xf32>
    %cst = arith.constant 1.000000e+00 : f32
    %34 = vector.broadcast %cst : f32 to vector<2x2x128xf32>
    %35 = arith.subf %34, %33 : vector<2x2x128xf32>
    %36 = arith.mulf %35, %35 : vector<2x2x128xf32>
    %37 = arith.mulf %36, %36 : vector<2x2x128xf32>
    %38 = arith.mulf %35, %37 : vector<2x2x128xf32>
    %cst_7 = arith.constant -5.000000e-01 : f32
    %39 = vector.broadcast %cst_7 : f32 to vector<2x2x128xf32>
    %40 = arith.mulf %39, %38 : vector<2x2x128xf32>
    %41 = arith.mulf %40, %32 : vector<2x2x128xf32>
    %cst_8 = arith.constant dense<0.000000e+00> : vector<2x128xf32>
    %42 = vector.multi_reduction <add>, %41, %cst_8 [0] : vector<2x2x128xf32> to vector<2x128xf32>
    %cst_9 = arith.constant dense<0.000000e+00> : vector<128xf32>
    %43 = vector.multi_reduction <add>, %42, %cst_9 [0] : vector<2x128xf32> to vector<128xf32>
    %44 = vector.shape_cast %43 : vector<128xf32> to vector<1x128xf32>
    %45 = vector.shape_cast %44 : vector<1x128xf32> to vector<1x1x1x128xf32>
    %c0_10 = arith.constant 0 : index
    %c0_11 = arith.constant 0 : index
    %c0_12 = arith.constant 0 : index
    %c0_13 = arith.constant 0 : index
    %46 = vector.load %arg4[%c0_10, %c0_11, %c0_12, %c0_13] : memref<1x1x1x128xf32, #tpu.memory_space<vmem>>, vector<1x1x1x128xf32>
    tpu.vector_store %arg4[%c0_10, %c0_11, %c0_12, %c0_13], %45 {strides = array<i32>} : memref<1x1x1x128xf32, #tpu.memory_space<vmem>>, vector<1x1x1x128xf32>,
    return
  }
  func.func @transform_0(%arg0: i32, %arg1: i32) -> (i32, i32, i32, i32) {
    %c0_i32 = arith.constant 0 : i32
    %c0_i32_0 = arith.constant 0 : i32
    %c0_i32_1 = arith.constant 0 : i32
    return %arg0, %c0_i32, %arg1, %c0_i32_0 : i32, i32, i32, i32
  }
  func.func @transform_1(%arg0: i32, %arg1: i32) -> (i32, i32, i32, i32) {
    %c0_i32 = arith.constant 0 : i32
    %c0_i32_0 = arith.constant 0 : i32
    %c0_i32_1 = arith.constant 0 : i32
    return %arg0, %c0_i32, %arg1, %c0_i32_0 : i32, i32, i32, i32
  }
  func.func @transform_2(%arg0: i32, %arg1: i32) -> (i32, i32, i32, i32) {
    %c0_i32 = arith.constant 0 : i32
    %c0_i32_0 = arith.constant 0 : i32
    %c0_i32_1 = arith.constant 0 : i32
    return %arg0, %arg1, %c0_i32, %c0_i32_0 : i32, i32, i32, i32
  }
}

</mosaic_0001>

<llo_original>
// kernel: tpu_custom_call.1
$region0: #{tpu_custom_call.1}
  #allocation0 [shape = 'u32[]', space=smem, size = 0x4, offset = 0x4, fixed_abs, tag = 'smem constant byte address 0x4 - core index']
  #allocation1 [shape = 'u32[144,128]{1,0:T(1,128)}', space=vmem, size = 0x12000, scoped, tag = 'internal scratch']
  %s0 = inlined_call_operand.hbm [shape: f32[2,3,2,128], index: 0, kind: input, shape index: {}]
  %s1 = inlined_call_operand.hbm [shape: f32[2,3,2,128], index: 1, kind: input, shape index: {}]
  %s2 = inlined_call_operand.hbm [shape: f32[1,1,1,128], index: 2, kind: output, shape index: {}]
  %s3 = sld [smem:[#allocation0]]
  $region26: #{tpu_custom_call.1} parent=0
    _
  %s5 = ssub.s32 1, %s3
  %s6 = scalar_select 0, %s5, %s3
  $region1: #{tpu_custom_call.1} parent=0
    #allocation2 [shape = 'u8[6144]{0}', space=vmem, size = 0x1800, scoped, tag = 'input window, operand 0, single buffered']
    #allocation3 [shape = 's32[1]{0}', space=sflag, size = 0x4, scoped, tag = 'scoped memory for tpu_custom_call.1']
    #allocation4 [shape = 's32[1]{0}', space=sflag, size = 0x4, scoped, tag = 'scoped memory for tpu_custom_call.1']
    #allocation5 [shape = 'u8[6144]{0}', space=vmem, size = 0x1800, scoped, tag = 'input window, operand 1, single buffered']
    #allocation6 [shape = 's32[1]{0}', space=sflag, size = 0x4, scoped, tag = 'scoped memory for tpu_custom_call.1']
    #allocation7 [shape = 'u8[512]{0}', space=vmem, size = 0x400, scoped, tag = 'output window, operand 0, single buffered']
    %7 = vsyncpa [#allocation3], 0
    %8 = vsyncpa [#allocation6], 0
    %9 = vsyncpa [#allocation4], 0
    // Predicated region
    $region2: #{tpu_custom_call.1} parent=1 // pred_check
      _
    $region3: #{tpu_custom_call.1} parent=1 // pred_check_branch
      %11 = sbr.rel (0) target = $region5
    $region4: #{tpu_custom_call.1} parent=1 // pred_region
      %s13 = ssub.s32 192, 192
      %14 = vsyncadd [#allocation3], %s13
      %s15 = sshll.u32 [#allocation2], 4
      %s16 = int_to_ptr.vmem [resolvable:$true] %s15
      %21 = dma.hbm_to_vmem [thread:$0]  %s0, 192, %s16, [#allocation3], 32, 32, 2
    $region5: #{tpu_custom_call.1} parent=1 // pred_fallthru
      _
    // Predicated region
    $region6: #{tpu_custom_call.1} parent=1 // pred_check
      _
    $region7: #{tpu_custom_call.1} parent=1 // pred_check_branch
      %23 = sbr.rel (0) target = $region9
    $region8: #{tpu_custom_call.1} parent=1 // pred_region
      %s25 = ssub.s32 192, 192
      %26 = vsyncadd [#allocation6], %s25
      %s27 = sshll.u32 [#allocation5], 4
      %s28 = int_to_ptr.vmem [resolvable:$true] %s27
      %33 = dma.hbm_to_vmem [thread:$0]  %s1, 192, %s28, [#allocation6], 32, 32, 2
    $region9: #{tpu_custom_call.1} parent=1 // pred_fallthru
      _
    // Predicated region
    $region10: #{tpu_custom_call.1} parent=1 // pred_check
      _
    $region11: #{tpu_custom_call.1} parent=1 // pred_check_branch
      %35 = sbr.rel (0) target = $region13
    $region12: #{tpu_custom_call.1} parent=1 // pred_region
      %36 = dma.done [#allocation3], 192
    $region13: #{tpu_custom_call.1} parent=1 // pred_fallthru
      _
    // Predicated region
    $region14: #{tpu_custom_call.1} parent=1 // pred_check
      _
    $region15: #{tpu_custom_call.1} parent=1 // pred_check_branch
      %38 = sbr.rel (0) target = $region17
    $region16: #{tpu_custom_call.1} parent=1 // pred_region
      %39 = dma.done [#allocation6], 192
    $region17: #{tpu_custom_call.1} parent=1 // pred_fallthru
      _
    %v40 = vld [vmem:[#allocation2] sm:$0x3]
    %v41 = vld [vmem:[#allocation2 + $0x2] sm:$0x3]
    %v42 = vld [vmem:[#allocation2 + $0x4] sm:$0x3]
    %v43 = vld [vmem:[#allocation2 + $0x6] sm:$0x3]
    %v44 = vld [vmem:[#allocation2 + $0x8] sm:$0x3]
    %v45 = vld [vmem:[#allocation2 + $0xa] sm:$0x3]
    %v46 = vld [vmem:[#allocation5] sm:$0x3]
    %v47 = vld [vmem:[#allocation5 + $0x2] sm:$0x3]
    %v48 = vld [vmem:[#allocation5 + $0x4] sm:$0x3]
    %v49 = vld [vmem:[#allocation5 + $0x6] sm:$0x3]
    %v50 = vld [vmem:[#allocation5 + $0x8] sm:$0x3]
    %v51 = vld [vmem:[#allocation5 + $0xa] sm:$0x3]
    %v52 = vmax.f32 %v40, %v41
    %v53 = vmax.f32 %v43, %v44
    %v54 = vmax.f32 %v52, %v42
    %v55 = vmax.f32 %v53, %v45
    %v56 = vsub.f32 %v40, %v54
    %v57 = vsub.f32 %v43, %v55
    %v58 = vsub.f32 %v41, %v54
    %v59 = vsub.f32 %v44, %v55
    %v60 = vsub.f32 %v42, %v54
    %v61 = vsub.f32 %v45, %v55
    %v62 = vmul.f32 %v56, 1.442695
    %v63 = vpow.pop %v62
    %v64 = vmul.f32 %v57, 1.442695
    %v65 = vpow.pop %v64
    %v66 = vmul.f32 %v58, 1.442695
    %v67 = vpow.pop %v66
    %v68 = vmul.f32 %v59, 1.442695
    %v69 = vpow.pop %v68
    %v70 = vadd.f32 %v63, %v67
    %v71 = vadd.f32 %v65, %v69
    %v72 = vmul.f32 %v60, 1.442695
    %v73 = vpow.pop %v72
    %v74 = vmul.f32 %v61, 1.442695
    %v75 = vpow.pop %v74
    %v76 = vadd.f32 %v70, %v73
    %v77 = vadd.f32 %v71, %v75
    %v78 = vlog2.pop %v76
    %v79 = vmul.f32 %v78, 0.6931472
    %v80 = vlog2.pop %v77
    %v81 = vmul.f32 %v80, 0.6931472
    %v82 = vsub.f32 %v56, %v79
    %v83 = vsub.f32 %v57, %v81
    %v84 = vmul.f32 %v46, %v82
    %v85 = vmul.f32 %v49, %v83
    %v86 = vsub.f32 %v58, %v79
    %v87 = vsub.f32 %v59, %v81
    %v88 = vmul.f32 %v47, %v86
    %v89 = vmul.f32 %v50, %v87
    %v90 = vadd.f32 %v84, %v88
    %v91 = vadd.f32 %v85, %v89
    %v92 = vsub.f32 %v60, %v79
    %v93 = vsub.f32 %v61, %v81
    %v94 = vmul.f32 %v48, %v92
    %v95 = vmul.f32 %v51, %v93
    %v96 = vadd.f32 %v90, %v94
    %v97 = vadd.f32 %v91, %v95
    %v98 = vmul.f32 %v96, 1.442695
    %v99 = vpow.pop %v98
    %v100 = vmul.f32 %v97, 1.442695
    %v101 = vpow.pop %v100
    %v102 = vsub.f32 1.0, %v99
    %v103 = vsub.f32 1.0, %v101
    %v104 = vmul.f32 %v102, %v102
    %v105 = vmul.f32 %v103, %v103
    %v106 = vmul.f32 %v104, %v104
    %v107 = vmul.f32 %v105, %v105
    %v108 = vmul.f32 %v102, %v106
    %v109 = vmul.f32 %v103, %v107
    %v110 = vmul.f32 %v108, -0.5
    %v111 = vmul.f32 %v109, -0.5
    %v112 = vmul.f32 %v110, %v96
    %v113 = vmul.f32 %v111, %v97
    %vm114 = vcmask 1041408
    %v115 = vsel %vm114, %v112, 0.0
    %v116 = vsel %vm114, %v113, 0.0
    %v117 = vadd.f32 %v115, %v116
    %v118 = vsel %vm114, %v117, 0.0
    %v119 = vrot.slane %v118, 4
    %v120 = vadd.f32 %v118, %v119
    %v121 = vrot.slane %v120, 2
    %v122 = vadd.f32 %v120, %v121
    %v123 = vrot.slane %v122, 1
    %v124 = vadd.f32 %v122, %v123
    %125 = vst [vmem:[#allocation7] sm:$0x1] %v124
    // Predicated region
    $region18: #{tpu_custom_call.1} parent=1 // pred_check
      _
    $region19: #{tpu_custom_call.1} parent=1 // pred_check_branch
      %127 = sbr.rel (0) target = $region21
    $region20: #{tpu_custom_call.1} parent=1 // pred_region
      %s129 = ssub.s32 16, 16
      %130 = vsyncadd [#allocation4], %s129
      %s132 = sshll.u32 [#allocation7], 4
      %s133 = int_to_ptr.vmem [resolvable:$true] %s132
      %135 = dma.vmem_to_hbm [thread:$0]  %s133, 16, %s2, [#allocation4]
    $region21: #{tpu_custom_call.1} parent=1 // pred_fallthru
      _
    // Predicated region
    $region22: #{tpu_custom_call.1} parent=1 // pred_check
      _
    $region23: #{tpu_custom_call.1} parent=1 // pred_check_branch
      %137 = sbr.rel (0) target = $region25
    $region24: #{tpu_custom_call.1} parent=1 // pred_region
      %138 = dma.done [#allocation4], 16
    $region25: #{tpu_custom_call.1} parent=1 // pred_fallthru
      _
    %139 = vsyncpa [#allocation3], 1
    %140 = vsyncpa [#allocation6], 1
    %141 = vsyncpa [#allocation4], 1

</llo_original>
